<compile_context>
chip_gen: v5e
topology: v5e:2x2
jax: 0.10.0
libtpu: 0.0.40
codegen_flags: <defaults>
</compile_context>

<pallas_src>
import functools

import jax
import jax.numpy as jnp
from jax import lax
from jax.experimental import pallas as pl
from jax.experimental.pallas import tpu as pltpu

EPS = 1e-5          # PyTorch BatchNorm2d default eps
CP = 128            # lane-padded channel count for MXU RHS / VMEM accumulators
MAX_TILE_ROWS = 1024


def _vmem_limit_bytes():
    # Per-chip sizing: v5e/v6e have 128 MiB physical VMEM, v7x only 64 MiB.
    try:
        cap = pltpu.get_tpu_info().vmem_capacity_bytes
        return int(min(cap // 2, 64 * 1024 * 1024))
    except Exception:
        return 32 * 1024 * 1024


def _pick_tile(m):
    """Largest row-tile (multiple of 8, <= MAX_TILE_ROWS) that divides M."""
    t = MAX_TILE_ROWS
    while t >= 8:
        if m % t == 0:
            return t
        t //= 2
    return m


# ----------------------------- Pallas kernels -----------------------------

def _matmul_bias_kernel(x_ref, w_ref, b_ref, o_ref):
    # ConvTranspose2d hot path: MXU matmul (all 2x2 taps in the lane dim) + bias.
    acc = jnp.dot(x_ref[...], w_ref[...], preferred_element_type=jnp.float32)
    o_ref[...] = (acc + b_ref[...]).astype(o_ref.dtype)


def _fused_conv_bn_relu_kernel(p_ref, w_ref, g_ref, b_ref, o_ref,
                               h_scr, sum_scr, sq_scr, *, tm, cout, inv_m):
    """Two-phase fused Conv2d (im2col matmul) + BatchNorm(train stats) + ReLU.

    phase 0 (program_id(0) == 0): matmul the LHS tile, keep the conv output in
      the resident VMEM scratch, accumulate per-channel sum / sum-of-squares.
    phase 1: fold stats into scale/shift and apply BN + ReLU to the VMEM-held
      conv output, storing only the real `cout` channels to HBM.
    """
    phase = pl.program_id(0)
    i = pl.program_id(1)

    @pl.when(phase == 0)
    def _conv_and_stats():
        @pl.when(i == 0)
        def _init():
            sum_scr[...] = jnp.zeros_like(sum_scr)
            sq_scr[...] = jnp.zeros_like(sq_scr)

        h = jnp.dot(p_ref[...], w_ref[...], preferred_element_type=jnp.float32)
        row = pl.multiple_of(i * tm, tm)
        h_scr[pl.ds(row, tm), :] = h
        sum_scr[...] += jnp.sum(h, axis=0, keepdims=True)
        sq_scr[...] += jnp.sum(h * h, axis=0, keepdims=True)

    @pl.when(phase == 1)
    def _bn_relu():
        # Training-mode BatchNorm: biased variance, eps = 1e-5.
        # NOTE: single-pass E[x^2]-E[x]^2 in f32; clamp guards tiny negatives.
        mean = sum_scr[...] * inv_m
        var = jnp.maximum(sq_scr[...] * inv_m - mean * mean, 0.0)
        scale = g_ref[...] * lax.rsqrt(var + EPS)
        shift = b_ref[...] - mean * scale

        row = pl.multiple_of(i * tm, tm)
        h = h_scr[pl.ds(row, tm), :]
        y = jnp.maximum(h * scale + shift, 0.0)
        o_ref[...] = y[:, :cout].astype(o_ref.dtype)


# --------------------------- pallas_call wrappers ---------------------------

def upsample_matmul(x2d, w2d, b2d):
    """ConvTranspose2d(k=2, s=2) as a single compact matmul (per-tap lanes)."""
    M, K = x2d.shape
    Nc = w2d.shape[1]
    return pl.pallas_call(
        _matmul_bias_kernel,
        out_shape=jax.ShapeDtypeStruct((M, Nc), jnp.float32),
        grid=(1,),
        in_specs=[pl.BlockSpec((M, K), lambda i: (0, 0)),
                  pl.BlockSpec((K, Nc), lambda i: (0, 0)),
                  pl.BlockSpec((1, Nc), lambda i: (0, 0))],
        out_specs=pl.BlockSpec((M, Nc), lambda i: (0, 0)),
        compiler_params=pltpu.CompilerParams(
            dimension_semantics=("arbitrary",),
            vmem_limit_bytes=_vmem_limit_bytes()),
    )(x2d, w2d, b2d)


def fused_conv_bn_relu(p2d, w2d_padded, gamma_p, beta_p, cout):
    """One pallas_call per conv stage: conv matmul + BN stats + BN apply + ReLU.

    The full (M, CP) conv activation lives in a VMEM scratch for the whole grid
    (fine for decoder-sized M; would need further tiling for very large M).
    Output is the compact (M, cout) activation (no lane padding in HBM).
    """
    M, K = p2d.shape
    tm = _pick_tile(M)
    nt = M // tm
    kern = functools.partial(_fused_conv_bn_relu_kernel,
                             tm=tm, cout=cout, inv_m=1.0 / M)
    return pl.pallas_call(
        kern,
        out_shape=jax.ShapeDtypeStruct((M, cout), jnp.float32),
        grid=(2, nt),
        in_specs=[
            # LHS tiles stream during phase 0; stay parked on the last block in
            # phase 1 (no extra DMA -- the block index does not change).
            pl.BlockSpec((tm, K), lambda p, i: (i * (1 - p) + (nt - 1) * p, 0)),
            pl.BlockSpec((K, CP), lambda p, i: (0, 0)),   # resident weights
            pl.BlockSpec((1, CP), lambda p, i: (0, 0)),   # gamma (padded)
            pl.BlockSpec((1, CP), lambda p, i: (0, 0)),   # beta  (padded)
        ],
        # Output blocks are only produced in phase 1; during phase 0 the index
        # stays pinned at 0 so no writeback happens until real data is written.
        out_specs=pl.BlockSpec((tm, cout), lambda p, i: (i * p, 0)),
        scratch_shapes=[pltpu.VMEM((M, CP), jnp.float32),   # conv output
                        pltpu.VMEM((1, CP), jnp.float32),   # per-channel sum
                        pltpu.VMEM((1, CP), jnp.float32)],  # per-channel sum sq
        compiler_params=pltpu.CompilerParams(
            # Sequential: phase 1 depends on all phase-0 tiles (shared scratch).
            dimension_semantics=("arbitrary", "arbitrary"),
            vmem_limit_bytes=_vmem_limit_bytes()),
    )(p2d, w2d_padded, gamma_p, beta_p)


# ------------------------------- glue (JAX) --------------------------------

def im2col_cat(parts, k, pad):
    """im2col with the channel-concat folded into the patch construction.

    parts: list of NHWC arrays with identical spatial dims; per-tap channel
    order is the concatenation order (matches torch.cat along channel dim).
    Returns (N*Ho*Wo, k*k*sum(C_i)), tap-major / concat-channel minor.
    """
    N, H, W, _ = parts[0].shape
    Ho, Wo = H + 2 * pad - k + 1, W + 2 * pad - k + 1
    padded = [jnp.pad(p, ((0, 0), (pad, pad), (pad, pad), (0, 0))) for p in parts]
    cols = [pp[:, i:i + Ho, j:j + Wo, :]
            for i in range(k) for j in range(k) for pp in padded]
    return jnp.concatenate(cols, axis=-1).reshape(N * Ho * Wo, -1), (Ho, Wo)


def w2d_pad(w_oihw):
    """Conv weight OIHW -> (k*k*Cin, CP) matmul RHS, output channels padded."""
    co, ci, kh, kw = w_oihw.shape
    w = jnp.transpose(w_oihw, (2, 3, 1, 0)).reshape(kh * kw * ci, co)
    return jnp.pad(w, ((0, 0), (0, CP - co)))


def bn_params_pad(gamma, beta):
    g = jnp.pad(gamma, (0, CP - gamma.shape[0]), constant_values=1.0).reshape(1, CP)
    b = jnp.pad(beta, (0, CP - beta.shape[0])).reshape(1, CP)
    return g, b


def decoder_block_forward(params, inputs_nchw, skip_nchw, *, k_size, st, pad, bias,
                          reverse_skip_concat=False):
    del bias  # conv biases cancel exactly under training-mode BatchNorm
    x = jnp.transpose(inputs_nchw, (0, 2, 3, 1))    # NHWC
    skip = jnp.transpose(skip_nchw, (0, 2, 3, 1))   # NHWC
    N, H, W, Cin = x.shape
    Cout = params["up_w"].shape[1]

    # --- ConvTranspose2d(in, out, kernel_size=2, stride=st) ---
    kt = 2
    # TODO(synk): only the non-overlapping case stride == kernel_size (2) is implemented.
    assert st == kt, "ConvTranspose2d kernel assumes stride == kernel_size == 2"
    wt = jnp.transpose(params["up_w"], (0, 2, 3, 1)).reshape(Cin, kt * kt * Cout)
    bt = jnp.tile(params["up_b"], kt * kt).reshape(1, kt * kt * Cout)

    y = upsample_matmul(x.reshape(N * H * W, Cin), wt, bt)      # (N*H*W, 4*Cout)
    # pixel shuffle (cheap XLA rearrangement on the compact 64 KB buffer)
    y = y.reshape(N, H, W, kt, kt, Cout).transpose(0, 1, 3, 2, 4, 5)
    y = y.reshape(N, H * kt, W * kt, Cout)

    # F.interpolate(..., mode='bilinear', align_corners=False) fallback (not hit here)
    if y.shape[1:3] != skip.shape[1:3]:
        y = jax.image.resize(y, (N, skip.shape[1], skip.shape[2], Cout), method="bilinear")

    # channel concat folded into the im2col construction
    parts = [y, skip] if reverse_skip_concat else [skip, y]

    # --- DoubleConvBlock: fused conv + BN(train stats) + ReLU, twice ---
    p1, (H1, W1) = im2col_cat(parts, k_size, pad)
    g1, b1 = bn_params_pad(params["bn1_g"], params["bn1_b"])
    y1 = fused_conv_bn_relu(p1, w2d_pad(params["c1_w"]), g1, b1, Cout)
    y1 = y1.reshape(N, H1, W1, Cout)

    p2, (H2, W2) = im2col_cat([y1], k_size, pad)
    g2, b2 = bn_params_pad(params["bn2_g"], params["bn2_b"])
    y2 = fused_conv_bn_relu(p2, w2d_pad(params["c2_w"]), g2, b2, Cout)
    y2 = y2.reshape(N, H2, W2, Cout)

    return jnp.transpose(y2, (0, 3, 1, 2))  # back to NCHW


# --------------------------- pure-JAX reference -----------------------------

def reference_forward(params, inputs, skip, *, k_size, st, pad, bias,
                      reverse_skip_concat=False):
    dn = ("NCHW", "OIHW", "NCHW")
    # ConvTranspose2d via input dilation + spatially flipped transposed weight
    Wf = jnp.flip(jnp.transpose(params["up_w"], (1, 0, 2, 3)), axis=(2, 3))
    x = lax.conv_general_dilated(inputs, Wf, window_strides=(1, 1),
                                 padding=[(2 - 1, 2 - 1), (2 - 1, 2 - 1)],
                                 lhs_dilation=(st, st), dimension_numbers=dn)
    x = x + params["up_b"][None, :, None, None]
    xcat = jnp.concatenate([x, skip] if reverse_skip_concat else [skip, x], axis=1)

    def conv(v, w, b):
        y = lax.conv_general_dilated(v, w, (1, 1), [(pad, pad), (pad, pad)],
                                     dimension_numbers=dn)
        return y + b[None, :, None, None]

    def bn_relu(v, g, be):
        m = jnp.mean(v, axis=(0, 2, 3), keepdims=True)
        var = jnp.mean((v - m) ** 2, axis=(0, 2, 3), keepdims=True)
        return jnp.maximum((v - m) * lax.rsqrt(var + EPS) * g[None, :, None, None]
                           + be[None, :, None, None], 0.0)

    b1 = params["c1_b"] if bias else jnp.zeros_like(params["c1_b"])
    b2 = params["c2_b"] if bias else jnp.zeros_like(params["c2_b"])
    h = bn_relu(conv(xcat, params["c1_w"], b1), params["bn1_g"], params["bn1_b"])
    h = bn_relu(conv(h, params["c2_w"], b2), params["bn2_g"], params["bn2_b"])
    return h


# --------------------------------- main -------------------------------------

if __name__ == "__main__":
    key = jax.random.PRNGKey(0)
    in_ch, out_ch = 8, 4           # concat(skip, upsampled) -> in_ch channels
    k_size, st, pad, b = 3, 2, 1, True
    N, H, W = 4, 16, 16            # skip has spatial 32x32

    ks = jax.random.split(key, 12)
    params = {
        "up_w":  0.1 * jax.random.normal(ks[0], (in_ch, out_ch, 2, 2), jnp.float32),
        "up_b":  0.1 * jax.random.normal(ks[1], (out_ch,), jnp.float32),
        "c1_w":  0.1 * jax.random.normal(ks[2], (out_ch, in_ch, k_size, k_size), jnp.float32),
        "c1_b":  0.1 * jax.random.normal(ks[3], (out_ch,), jnp.float32),
        "bn1_g": 1.0 + 0.1 * jax.random.normal(ks[4], (out_ch,), jnp.float32),
        "bn1_b": 0.1 * jax.random.normal(ks[5], (out_ch,), jnp.float32),
        "c2_w":  0.1 * jax.random.normal(ks[6], (out_ch, out_ch, k_size, k_size), jnp.float32),
        "c2_b":  0.1 * jax.random.normal(ks[7], (out_ch,), jnp.float32),
        "bn2_g": 1.0 + 0.1 * jax.random.normal(ks[8], (out_ch,), jnp.float32),
        "bn2_b": 0.1 * jax.random.normal(ks[9], (out_ch,), jnp.float32),
    }
    inputs = jax.random.normal(ks[10], (N, in_ch, H, W), jnp.float32)
    skip = jax.random.normal(ks[11], (N, out_ch, 2 * H, 2 * W), jnp.float32)

    out = decoder_block_forward(params, inputs, skip,
                                k_size=k_size, st=st, pad=pad, bias=b)
    out = jax.block_until_ready(out)

    ref = reference_forward(params, inputs, skip,
                            k_size=k_size, st=st, pad=pad, bias=b)
    assert out.shape == ref.shape == (N, out_ch, 2 * H, 2 * W), (out.shape, ref.shape)
    err = float(jnp.max(jnp.abs(out - ref)))
    assert jnp.allclose(out, ref, atol=2e-4, rtol=2e-4), f"max abs err {err}"
    print("KERNEL_OK")
</pallas_src>

<mosaic_0001>
module attributes {stable_mosaic.version = 11 : i64} {
  func.func @_matmul_bias_kernel(%arg0: i32, %arg1: memref<1024x8xf32, #tpu.memory_space<vmem>>, %arg2: memref<8x16xf32, #tpu.memory_space<vmem>>, %arg3: memref<1x16xf32, #tpu.memory_space<vmem>>, %arg4: memref<1024x16xf32, #tpu.memory_space<vmem>>) attributes {dimension_semantics = [#tpu.dimension_semantics<arbitrary>], iteration_bounds = array<i64: 1>, scalar_prefetch = 0 : i64, scratch_operands = 0 : i64, tpu.core_type = #tpu.core_type<tc>, window_params = [{pipeline_mode = #tpu.pipeline_mode<synchronous>, transform_indices = @transform_0, window_bounds = array<i64: 1024, 8>}, {pipeline_mode = #tpu.pipeline_mode<synchronous>, transform_indices = @transform_1, window_bounds = array<i64: 8, 16>}, {pipeline_mode = #tpu.pipeline_mode<synchronous>, transform_indices = @transform_2, window_bounds = array<i64: 1, 16>}, {pipeline_mode = #tpu.pipeline_mode<synchronous>, transform_indices = @transform_3, window_bounds = array<i64: 1024, 16>}]} {
    %c0 = arith.constant 0 : index
    %c0_0 = arith.constant 0 : index
    %0 = vector.load %arg1[%c0, %c0_0] : memref<1024x8xf32, #tpu.memory_space<vmem>>, vector<1024x8xf32>
    %c0_1 = arith.constant 0 : index
    %c0_2 = arith.constant 0 : index
    %1 = vector.load %arg2[%c0_1, %c0_2] : memref<8x16xf32, #tpu.memory_space<vmem>>, vector<8x16xf32>
    %cst = arith.constant dense<0.000000e+00> : vector<1024x16xf32>
    %2 = tpu.matmul %0, %1, %cst {dimension_numbers = #tpu.dot_dimension_numbers<[1], [0], [0], [1], [0, 0, 1, 1], [], []>} : vector<1024x8xf32>, vector<8x16xf32>, vector<1024x16xf32> -> vector<1024x16xf32>
    %c0_3 = arith.constant 0 : index
    %c0_4 = arith.constant 0 : index
    %3 = vector.load %arg3[%c0_3, %c0_4] : memref<1x16xf32, #tpu.memory_space<vmem>>, vector<1x16xf32>
    %4 = vector.broadcast %3 : vector<1x16xf32> to vector<1024x16xf32>
    %5 = arith.addf %2, %4 : vector<1024x16xf32>
    %c0_5 = arith.constant 0 : index
    %c0_6 = arith.constant 0 : index
    %6 = vector.load %arg4[%c0_5, %c0_6] : memref<1024x16xf32, #tpu.memory_space<vmem>>, vector<1024x16xf32>
    tpu.vector_store %arg4[%c0_5, %c0_6], %5 {strides = array<i32>} : memref<1024x16xf32, #tpu.memory_space<vmem>>, vector<1024x16xf32>,
    return
  }
  func.func @transform_0(%arg0: i32) -> (i32, i32) {
    %c0_i32 = arith.constant 0 : i32
    %c0_i32_0 = arith.constant 0 : i32
    %c0_i32_1 = arith.constant 0 : i32
    return %c0_i32, %c0_i32_0 : i32, i32
  }
  func.func @transform_1(%arg0: i32) -> (i32, i32) {
    %c0_i32 = arith.constant 0 : i32
    %c0_i32_0 = arith.constant 0 : i32
    %c0_i32_1 = arith.constant 0 : i32
    return %c0_i32, %c0_i32_0 : i32, i32
  }
  func.func @transform_2(%arg0: i32) -> (i32, i32) {
    %c0_i32 = arith.constant 0 : i32
    %c0_i32_0 = arith.constant 0 : i32
    %c0_i32_1 = arith.constant 0 : i32
    return %c0_i32, %c0_i32_0 : i32, i32
  }
  func.func @transform_3(%arg0: i32) -> (i32, i32) {
    %c0_i32 = arith.constant 0 : i32
    %c0_i32_0 = arith.constant 0 : i32
    %c0_i32_1 = arith.constant 0 : i32
    return %c0_i32, %c0_i32_0 : i32, i32
  }
}

</mosaic_0001>

<llo_original>
// kernel: tpu_custom_call.1
$region0: #{tpu_custom_call.1}
  #allocation0 [shape = 'u32[]', space=smem, size = 0x4, offset = 0x4, fixed_abs, tag = 'smem constant byte address 0x4 - core index']
  #allocation1 [shape = 'u32[72,128]{1,0:T(1,128)}', space=vmem, size = 0x9000, scoped, tag = 'internal scratch']
  %s0 = inlined_call_operand.vmem [shape: f32[1024,8], index: 0, kind: input, shape index: {}]
  %s1 = inlined_call_operand.vmem [shape: f32[8,16], index: 1, kind: input, shape index: {}]
  %s2 = inlined_call_operand.vmem [shape: f32[1,16], index: 2, kind: input, shape index: {}]
  %s3 = inlined_call_operand.vmem [shape: f32[1024,16], index: 3, kind: output, shape index: {}]
  %s4 = sld [smem:[#allocation0]]
  $region22: #{tpu_custom_call.1} parent=0
    _
  %s6 = ssub.s32 1, %s4
  %s7 = scalar_select 0, %s6, %s4
  // Predicated region
  $region2: #{tpu_custom_call.1} parent=0 // pred_check
    _
  $region3: #{tpu_custom_call.1} parent=0 // pred_check_branch
    %9 = sbr.rel (0) target = $region5
  $region4: #{tpu_custom_call.1} parent=0 // pred_region
    _
  $region5: #{tpu_custom_call.1} parent=0 // pred_fallthru
    _
  // Predicated region
  $region6: #{tpu_custom_call.1} parent=0 // pred_check
    _
  $region7: #{tpu_custom_call.1} parent=0 // pred_check_branch
    %11 = sbr.rel (0) target = $region9
  $region8: #{tpu_custom_call.1} parent=0 // pred_region
    _
  $region9: #{tpu_custom_call.1} parent=0 // pred_fallthru
    _
  // Predicated region
  $region10: #{tpu_custom_call.1} parent=0 // pred_check
    _
  $region11: #{tpu_custom_call.1} parent=0 // pred_check_branch
    %13 = sbr.rel (0) target = $region13
  $region12: #{tpu_custom_call.1} parent=0 // pred_region
    _
  $region13: #{tpu_custom_call.1} parent=0 // pred_fallthru
    _
  %v14 = vld [vmem:[%s0] sm:$0xff]
  %v15 = vld [vmem:[%s0 + $0x8] sm:$0xff]
  %v16 = vld [vmem:[%s0 + $0x10] sm:$0xff]
  %v17 = vld [vmem:[%s0 + $0x18] sm:$0xff]
  %v18 = vld [vmem:[%s0 + $0x20] sm:$0xff]
  %v19 = vld [vmem:[%s0 + $0x28] sm:$0xff]
  %v20 = vld [vmem:[%s0 + $0x30] sm:$0xff]
  %v21 = vld [vmem:[%s0 + $0x38] sm:$0xff]
  %v22 = vld [vmem:[%s0 + $0x40] sm:$0xff]
  %v23 = vld [vmem:[%s0 + $0x48] sm:$0xff]
  %v24 = vld [vmem:[%s0 + $0x50] sm:$0xff]
  %v25 = vld [vmem:[%s0 + $0x58] sm:$0xff]
  %v26 = vld [vmem:[%s0 + $0x60] sm:$0xff]
  %v27 = vld [vmem:[%s0 + $0x68] sm:$0xff]
  %v28 = vld [vmem:[%s0 + $0x70] sm:$0xff]
  %v29 = vld [vmem:[%s0 + $0x78] sm:$0xff]
  %v30 = vld [vmem:[%s0 + $0x80] sm:$0xff]
  %v31 = vld [vmem:[%s0 + $0x88] sm:$0xff]
  %v32 = vld [vmem:[%s0 + $0x90] sm:$0xff]
  %v33 = vld [vmem:[%s0 + $0x98] sm:$0xff]
  %v34 = vld [vmem:[%s0 + $0xa0] sm:$0xff]
  %v35 = vld [vmem:[%s0 + $0xa8] sm:$0xff]
  %v36 = vld [vmem:[%s0 + $0xb0] sm:$0xff]
  %v37 = vld [vmem:[%s0 + $0xb8] sm:$0xff]
  %v38 = vld [vmem:[%s0 + $0xc0] sm:$0xff]
  %v39 = vld [vmem:[%s0 + $0xc8] sm:$0xff]
  %v40 = vld [vmem:[%s0 + $0xd0] sm:$0xff]
  %v41 = vld [vmem:[%s0 + $0xd8] sm:$0xff]
  %v42 = vld [vmem:[%s0 + $0xe0] sm:$0xff]
  %v43 = vld [vmem:[%s0 + $0xe8] sm:$0xff]
  %v44 = vld [vmem:[%s0 + $0xf0] sm:$0xff]
  %v45 = vld [vmem:[%s0 + $0xf8] sm:$0xff]
  %v46 = vld [vmem:[%s0 + $0x100] sm:$0xff]
  %v47 = vld [vmem:[%s0 + $0x108] sm:$0xff]
  %v48 = vld [vmem:[%s0 + $0x110] sm:$0xff]
  %v49 = vld [vmem:[%s0 + $0x118] sm:$0xff]
  %v50 = vld [vmem:[%s0 + $0x120] sm:$0xff]
  %v51 = vld [vmem:[%s0 + $0x128] sm:$0xff]
  %v52 = vld [vmem:[%s0 + $0x130] sm:$0xff]
  %v53 = vld [vmem:[%s0 + $0x138] sm:$0xff]
  %v54 = vld [vmem:[%s0 + $0x140] sm:$0xff]
  %v55 = vld [vmem:[%s0 + $0x148] sm:$0xff]
  %v56 = vld [vmem:[%s0 + $0x150] sm:$0xff]
  %v57 = vld [vmem:[%s0 + $0x158] sm:$0xff]
  %v58 = vld [vmem:[%s0 + $0x160] sm:$0xff]
  %v59 = vld [vmem:[%s0 + $0x168] sm:$0xff]
  %v60 = vld [vmem:[%s0 + $0x170] sm:$0xff]
  %v61 = vld [vmem:[%s0 + $0x178] sm:$0xff]
  %v62 = vld [vmem:[%s0 + $0x180] sm:$0xff]
  %v63 = vld [vmem:[%s0 + $0x188] sm:$0xff]
  %v64 = vld [vmem:[%s0 + $0x190] sm:$0xff]
  %v65 = vld [vmem:[%s0 + $0x198] sm:$0xff]
  %v66 = vld [vmem:[%s0 + $0x1a0] sm:$0xff]
  %v67 = vld [vmem:[%s0 + $0x1a8] sm:$0xff]
  %v68 = vld [vmem:[%s0 + $0x1b0] sm:$0xff]
  %v69 = vld [vmem:[%s0 + $0x1b8] sm:$0xff]
  %v70 = vld [vmem:[%s0 + $0x1c0] sm:$0xff]
  %v71 = vld [vmem:[%s0 + $0x1c8] sm:$0xff]
  %v72 = vld [vmem:[%s0 + $0x1d0] sm:$0xff]
  %v73 = vld [vmem:[%s0 + $0x1d8] sm:$0xff]
  %v74 = vld [vmem:[%s0 + $0x1e0] sm:$0xff]
  %v75 = vld [vmem:[%s0 + $0x1e8] sm:$0xff]
  %v76 = vld [vmem:[%s0 + $0x1f0] sm:$0xff]
  %v77 = vld [vmem:[%s0 + $0x1f8] sm:$0xff]
  %v78 = vld [vmem:[%s0 + $0x200] sm:$0xff]
  %v79 = vld [vmem:[%s0 + $0x208] sm:$0xff]
  %v80 = vld [vmem:[%s0 + $0x210] sm:$0xff]
  %v81 = vld [vmem:[%s0 + $0x218] sm:$0xff]
  %v82 = vld [vmem:[%s0 + $0x220] sm:$0xff]
  %v83 = vld [vmem:[%s0 + $0x228] sm:$0xff]
  %v84 = vld [vmem:[%s0 + $0x230] sm:$0xff]
  %v85 = vld [vmem:[%s0 + $0x238] sm:$0xff]
  %v86 = vld [vmem:[%s0 + $0x240] sm:$0xff]
  %v87 = vld [vmem:[%s0 + $0x248] sm:$0xff]
  %v88 = vld [vmem:[%s0 + $0x250] sm:$0xff]
  %v89 = vld [vmem:[%s0 + $0x258] sm:$0xff]
  %v90 = vld [vmem:[%s0 + $0x260] sm:$0xff]
  %v91 = vld [vmem:[%s0 + $0x268] sm:$0xff]
  %v92 = vld [vmem:[%s0 + $0x270] sm:$0xff]
  %v93 = vld [vmem:[%s0 + $0x278] sm:$0xff]
  %v94 = vld [vmem:[%s0 + $0x280] sm:$0xff]
  %v95 = vld [vmem:[%s0 + $0x288] sm:$0xff]
  %v96 = vld [vmem:[%s0 + $0x290] sm:$0xff]
  %v97 = vld [vmem:[%s0 + $0x298] sm:$0xff]
  %v98 = vld [vmem:[%s0 + $0x2a0] sm:$0xff]
  %v99 = vld [vmem:[%s0 + $0x2a8] sm:$0xff]
  %v100 = vld [vmem:[%s0 + $0x2b0] sm:$0xff]
  %v101 = vld [vmem:[%s0 + $0x2b8] sm:$0xff]
  %v102 = vld [vmem:[%s0 + $0x2c0] sm:$0xff]
  %v103 = vld [vmem:[%s0 + $0x2c8] sm:$0xff]
  %v104 = vld [vmem:[%s0 + $0x2d0] sm:$0xff]
  %v105 = vld [vmem:[%s0 + $0x2d8] sm:$0xff]
  %v106 = vld [vmem:[%s0 + $0x2e0] sm:$0xff]
  %v107 = vld [vmem:[%s0 + $0x2e8] sm:$0xff]
  %v108 = vld [vmem:[%s0 + $0x2f0] sm:$0xff]
  %v109 = vld [vmem:[%s0 + $0x2f8] sm:$0xff]
  %v110 = vld [vmem:[%s0 + $0x300] sm:$0xff]
  %v111 = vld [vmem:[%s0 + $0x308] sm:$0xff]
  %v112 = vld [vmem:[%s0 + $0x310] sm:$0xff]
  %v113 = vld [vmem:[%s0 + $0x318] sm:$0xff]
  %v114 = vld [vmem:[%s0 + $0x320] sm:$0xff]
  %v115 = vld [vmem:[%s0 + $0x328] sm:$0xff]
  %v116 = vld [vmem:[%s0 + $0x330] sm:$0xff]
  %v117 = vld [vmem:[%s0 + $0x338] sm:$0xff]
  %v118 = vld [vmem:[%s0 + $0x340] sm:$0xff]
  %v119 = vld [vmem:[%s0 + $0x348] sm:$0xff]
  %v120 = vld [vmem:[%s0 + $0x350] sm:$0xff]
  %v121 = vld [vmem:[%s0 + $0x358] sm:$0xff]
  %v122 = vld [vmem:[%s0 + $0x360] sm:$0xff]
  %v123 = vld [vmem:[%s0 + $0x368] sm:$0xff]
  %v124 = vld [vmem:[%s0 + $0x370] sm:$0xff]
  %v125 = vld [vmem:[%s0 + $0x378] sm:$0xff]
  %v126 = vld [vmem:[%s0 + $0x380] sm:$0xff]
  %v127 = vld [vmem:[%s0 + $0x388] sm:$0xff]
  %v128 = vld [vmem:[%s0 + $0x390] sm:$0xff]
  %v129 = vld [vmem:[%s0 + $0x398] sm:$0xff]
  %v130 = vld [vmem:[%s0 + $0x3a0] sm:$0xff]
  %v131 = vld [vmem:[%s0 + $0x3a8] sm:$0xff]
  %v132 = vld [vmem:[%s0 + $0x3b0] sm:$0xff]
  %v133 = vld [vmem:[%s0 + $0x3b8] sm:$0xff]
  %v134 = vld [vmem:[%s0 + $0x3c0] sm:$0xff]
  %v135 = vld [vmem:[%s0 + $0x3c8] sm:$0xff]
  %v136 = vld [vmem:[%s0 + $0x3d0] sm:$0xff]
  %v137 = vld [vmem:[%s0 + $0x3d8] sm:$0xff]
  %v138 = vld [vmem:[%s0 + $0x3e0] sm:$0xff]
  %v139 = vld [vmem:[%s0 + $0x3e8] sm:$0xff]
  %v140 = vld [vmem:[%s0 + $0x3f0] sm:$0xff]
  %v141 = vld [vmem:[%s0 + $0x3f8] sm:$0xff]
  %v142 = vld [vmem:[%s1] sm:$0xff]
  %v143 = vld [vmem:[%s2] sm:$0x1]
  %v145 = vperm.slane %v143, 0
  %vm147 = vcmask 64512
  %v149 = vsel %vm147, %v14, 0
  %v152 = vsel %vm147, %v15, 0
  %v155 = vsel %vm147, %v16, 0
  %v158 = vsel %vm147, %v17, 0
  %v161 = vsel %vm147, %v18, 0
  %v164 = vsel %vm147, %v19, 0
  %v167 = vsel %vm147, %v20, 0
  %v170 = vsel %vm147, %v21, 0
  %v173 = vsel %vm147, %v22, 0
  %v176 = vsel %vm147, %v23, 0
  %v179 = vsel %vm147, %v24, 0
  %v182 = vsel %vm147, %v25, 0
  %v185 = vsel %vm147, %v26, 0
  %v188 = vsel %vm147, %v27, 0
  %v191 = vsel %vm147, %v28, 0
  %v194 = vsel %vm147, %v29, 0
  %v197 = vsel %vm147, %v30, 0
  %v200 = vsel %vm147, %v31, 0
  %v203 = vsel %vm147, %v32, 0
  %v206 = vsel %vm147, %v33, 0
  %v209 = vsel %vm147, %v34, 0
  %v212 = vsel %vm147, %v35, 0
  %v215 = vsel %vm147, %v36, 0
  %v218 = vsel %vm147, %v37, 0
  %v221 = vsel %vm147, %v38, 0
  %v224 = vsel %vm147, %v39, 0
  %v227 = vsel %vm147, %v40, 0
  %v230 = vsel %vm147, %v41, 0
  %v233 = vsel %vm147, %v42, 0
  %v236 = vsel %vm147, %v43, 0
  %v239 = vsel %vm147, %v44, 0
  %v242 = vsel %vm147, %v45, 0
  %v245 = vsel %vm147, %v46, 0
  %v248 = vsel %vm147, %v47, 0
  %v251 = vsel %vm147, %v48, 0
  %v254 = vsel %vm147, %v49, 0
  %v257 = vsel %vm147, %v50, 0
  %v260 = vsel %vm147, %v51, 0
  %v263 = vsel %vm147, %v52, 0
  %v266 = vsel %vm147, %v53, 0
  %v269 = vsel %vm147, %v54, 0
  %v272 = vsel %vm147, %v55, 0
  %v275 = vsel %vm147, %v56, 0
  %v278 = vsel %vm147, %v57, 0
  %v281 = vsel %vm147, %v58, 0
  %v284 = vsel %vm147, %v59, 0
  %v287 = vsel %vm147, %v60, 0
  %v290 = vsel %vm147, %v61, 0
  %v293 = vsel %vm147, %v62, 0
  %v296 = vsel %vm147, %v63, 0
  %v299 = vsel %vm147, %v64, 0
  %v302 = vsel %vm147, %v65, 0
  %v305 = vsel %vm147, %v66, 0
  %v308 = vsel %vm147, %v67, 0
  %v311 = vsel %vm147, %v68, 0
  %v314 = vsel %vm147, %v69, 0
  %v317 = vsel %vm147, %v70, 0
  %v320 = vsel %vm147, %v71, 0
  %v323 = vsel %vm147, %v72, 0
  %v326 = vsel %vm147, %v73, 0
  %v329 = vsel %vm147, %v74, 0
  %v332 = vsel %vm147, %v75, 0
  %v335 = vsel %vm147, %v76, 0
  %v338 = vsel %vm147, %v77, 0
  %v341 = vsel %vm147, %v78, 0
  %v344 = vsel %vm147, %v79, 0
  %v347 = vsel %vm147, %v80, 0
  %v350 = vsel %vm147, %v81, 0
  %v353 = vsel %vm147, %v82, 0
  %v356 = vsel %vm147, %v83, 0
  %v359 = vsel %vm147, %v84, 0
  %v362 = vsel %vm147, %v85, 0
  %v365 = vsel %vm147, %v86, 0
  %v368 = vsel %vm147, %v87, 0
  %v371 = vsel %vm147, %v88, 0
  %v374 = vsel %vm147, %v89, 0
  %v377 = vsel %vm147, %v90, 0
  %v380 = vsel %vm147, %v91, 0
  %v383 = vsel %vm147, %v92, 0
  %v386 = vsel %vm147, %v93, 0
  %v389 = vsel %vm147, %v94, 0
  %v392 = vsel %vm147, %v95, 0
  %v395 = vsel %vm147, %v96, 0
  %v398 = vsel %vm147, %v97, 0
  %v401 = vsel %vm147, %v98, 0
  %v404 = vsel %vm147, %v99, 0
  %v407 = vsel %vm147, %v100, 0
  %v410 = vsel %vm147, %v101, 0
  %v413 = vsel %vm147, %v102, 0
  %v416 = vsel %vm147, %v103, 0
  %v419 = vsel %vm147, %v104, 0
  %v422 = vsel %vm147, %v105, 0
  %v425 = vsel %vm147, %v106, 0
  %v428 = vsel %vm147, %v107, 0
  %v431 = vsel %vm147, %v108, 0
  %v434 = vsel %vm147, %v109, 0
  %v437 = vsel %vm147, %v110, 0
  %v440 = vsel %vm147, %v111, 0
  %v443 = vsel %vm147, %v112, 0
  %v446 = vsel %vm147, %v113, 0
  %v449 = vsel %vm147, %v114, 0
  %v452 = vsel %vm147, %v115, 0
  %v455 = vsel %vm147, %v116, 0
  %v458 = vsel %vm147, %v117, 0
  %v461 = vsel %vm147, %v118, 0
  %v464 = vsel %vm147, %v119, 0
  %v467 = vsel %vm147, %v120, 0
  %v470 = vsel %vm147, %v121, 0
  %v473 = vsel %vm147, %v122, 0
  %v476 = vsel %vm147, %v123, 0
  %v479 = vsel %vm147, %v124, 0
  %v482 = vsel %vm147, %v125, 0
  %v485 = vsel %vm147, %v126, 0
  %v488 = vsel %vm147, %v127, 0
  %v491 = vsel %vm147, %v128, 0
  %v494 = vsel %vm147, %v129, 0
  %v497 = vsel %vm147, %v130, 0
  %v500 = vsel %vm147, %v131, 0
  %v503 = vsel %vm147, %v132, 0
  %v506 = vsel %vm147, %v133, 0
  %v509 = vsel %vm147, %v134, 0
  %v512 = vsel %vm147, %v135, 0
  %v515 = vsel %vm147, %v136, 0
  %v518 = vsel %vm147, %v137, 0
  %v521 = vsel %vm147, %v138, 0
  %v524 = vsel %vm147, %v139, 0
  %v527 = vsel %vm147, %v140, 0
  %v530 = vsel %vm147, %v141, 0
  %532 = vmatpush.msra.mxu0 0.0
  %533 = vmatpush.msra.mxu0 0.0
  %534 = vmatpush.msra.mxu0 0.0
  %535 = vmatpush.msra.mxu0 0.0
  %536 = vmatpush.msra.mxu0 0.0
  %537 = vmatpush.msra.mxu0 0.0
  %538 = vmatpush.msra.mxu0 0.0
  %539 = vmatpush.msra.mxu0 0.0
  %540 = vmatpush.msra.mxu0 0.0
  %541 = vmatpush.msra.mxu0 0.0
  %542 = vmatpush.msra.mxu0 0.0
  %543 = vmatpush.msra.mxu0 0.0
  %544 = vmatpush.msra.mxu0 0.0
  %545 = vmatpush.msra.mxu0 0.0
  %546 = vmatpush.msra.mxu0 0.0
  %547 = vmatpush.msra.mxu0 %v142
  %548 = vmatmul.f32.gmra.mxu0 %v149
  %v549 = vpop.f32.mrf.mxu0
  %v550 = vadd.f32 %v145, %v549
  %551 = vmatmul.f32.gmra.mxu0 %v152
  %v552 = vpop.f32.mrf.mxu0
  %v553 = vadd.f32 %v145, %v552
  %554 = vmatmul.f32.gmra.mxu0 %v155
  %v555 = vpop.f32.mrf.mxu0
  %v556 = vadd.f32 %v145, %v555
  %557 = vmatmul.f32.gmra.mxu0 %v158
  %v558 = vpop.f32.mrf.mxu0
  %v559 = vadd.f32 %v145, %v558
  %560 = vmatmul.f32.gmra.mxu0 %v161
  %v561 = vpop.f32.mrf.mxu0
  %v562 = vadd.f32 %v145, %v561
  %563 = vmatmul.f32.gmra.mxu0 %v164
  %v564 = vpop.f32.mrf.mxu0
  %v565 = vadd.f32 %v145, %v564
  %566 = vmatmul.f32.gmra.mxu0 %v167
  %v567 = vpop.f32.mrf.mxu0
  %v568 = vadd.f32 %v145, %v567
  %569 = vmatmul.f32.gmra.mxu0 %v170
  %v570 = vpop.f32.mrf.mxu0
  %v571 = vadd.f32 %v145, %v570
  %572 = vmatmul.f32.gmra.mxu0 %v173
  %v573 = vpop.f32.mrf.mxu0
  %v574 = vadd.f32 %v145, %v573
  %575 = vmatmul.f32.gmra.mxu0 %v176
  %v576 = vpop.f32.mrf.mxu0
  %v577 = vadd.f32 %v145, %v576
  %578 = vmatmul.f32.gmra.mxu0 %v179
  %v579 = vpop.f32.mrf.mxu0
  %v580 = vadd.f32 %v145, %v579
  %581 = vmatmul.f32.gmra.mxu0 %v182
  %v582 = vpop.f32.mrf.mxu0
  %v583 = vadd.f32 %v145, %v582
  %584 = vmatmul.f32.gmra.mxu0 %v185
  %v585 = vpop.f32.mrf.mxu0
  %v586 = vadd.f32 %v145, %v585
  %587 = vmatmul.f32.gmra.mxu0 %v188
  %v588 = vpop.f32.mrf.mxu0
  %v589 = vadd.f32 %v145, %v588
  %590 = vmatmul.f32.gmra.mxu0 %v191
  %v591 = vpop.f32.mrf.mxu0
  %v592 = vadd.f32 %v145, %v591
  %593 = vmatmul.f32.gmra.mxu0 %v194
  %v594 = vpop.f32.mrf.mxu0
  %v595 = vadd.f32 %v145, %v594
  %596 = vmatmul.f32.gmra.mxu0 %v197
  %v597 = vpop.f32.mrf.mxu0
  %v598 = vadd.f32 %v145, %v597
  %599 = vmatmul.f32.gmra.mxu0 %v200
  %v600 = vpop.f32.mrf.mxu0
  %v601 = vadd.f32 %v145, %v600
  %602 = vmatmul.f32.gmra.mxu0 %v203
  %v603 = vpop.f32.mrf.mxu0
  %v604 = vadd.f32 %v145, %v603
  %605 = vmatmul.f32.gmra.mxu0 %v206
  %v606 = vpop.f32.mrf.mxu0
  %v607 = vadd.f32 %v145, %v606
  %608 = vmatmul.f32.gmra.mxu0 %v209
  %v609 = vpop.f32.mrf.mxu0
  %v610 = vadd.f32 %v145, %v609
  %611 = vmatmul.f32.gmra.mxu0 %v212
  %v612 = vpop.f32.mrf.mxu0
  %v613 = vadd.f32 %v145, %v612
  %614 = vmatmul.f32.gmra.mxu0 %v215
  %v615 = vpop.f32.mrf.mxu0
  %v616 = vadd.f32 %v145, %v615
  %617 = vmatmul.f32.gmra.mxu0 %v218
  %v618 = vpop.f32.mrf.mxu0
  %v619 = vadd.f32 %v145, %v618
  %620 = vmatmul.f32.gmra.mxu0 %v221
  %v621 = vpop.f32.mrf.mxu0
  %v622 = vadd.f32 %v145, %v621
  %623 = vmatmul.f32.gmra.mxu0 %v224
  %v624 = vpop.f32.mrf.mxu0
  %v625 = vadd.f32 %v145, %v624
  %626 = vmatmul.f32.gmra.mxu0 %v227
  %v627 = vpop.f32.mrf.mxu0
  %v628 = vadd.f32 %v145, %v627
  %629 = vmatmul.f32.gmra.mxu0 %v230
  %v630 = vpop.f32.mrf.mxu0
  %v631 = vadd.f32 %v145, %v630
  %632 = vmatmul.f32.gmra.mxu0 %v233
  %v633 = vpop.f32.mrf.mxu0
  %v634 = vadd.f32 %v145, %v633
  %635 = vmatmul.f32.gmra.mxu0 %v236
  %v636 = vpop.f32.mrf.mxu0
  %v637 = vadd.f32 %v145, %v636
  %638 = vmatmul.f32.gmra.mxu0 %v239
  %v639 = vpop.f32.mrf.mxu0
  %v640 = vadd.f32 %v145, %v639
  %641 = vmatmul.f32.gmra.mxu0 %v242
  %v642 = vpop.f32.mrf.mxu0
  %v643 = vadd.f32 %v145, %v642
  %644 = vmatmul.f32.gmra.mxu0 %v245
  %v645 = vpop.f32.mrf.mxu0
  %v646 = vadd.f32 %v145, %v645
  %647 = vmatmul.f32.gmra.mxu0 %v248
  %v648 = vpop.f32.mrf.mxu0
  %v649 = vadd.f32 %v145, %v648
  %650 = vmatmul.f32.gmra.mxu0 %v251
  %v651 = vpop.f32.mrf.mxu0
  %v652 = vadd.f32 %v145, %v651
  %653 = vmatmul.f32.gmra.mxu0 %v254
  %v654 = vpop.f32.mrf.mxu0
  %v655 = vadd.f32 %v145, %v654
  %656 = vmatmul.f32.gmra.mxu0 %v257
  %v657 = vpop.f32.mrf.mxu0
  %v658 = vadd.f32 %v145, %v657
  %659 = vmatmul.f32.gmra.mxu0 %v260
  %v660 = vpop.f32.mrf.mxu0
  %v661 = vadd.f32 %v145, %v660
  %662 = vmatmul.f32.gmra.mxu0 %v263
  %v663 = vpop.f32.mrf.mxu0
  %v664 = vadd.f32 %v145, %v663
  %665 = vmatmul.f32.gmra.mxu0 %v266
  %v666 = vpop.f32.mrf.mxu0
  %v667 = vadd.f32 %v145, %v666
  %668 = vmatmul.f32.gmra.mxu0 %v269
  %v669 = vpop.f32.mrf.mxu0
  %v670 = vadd.f32 %v145, %v669
  %671 = vmatmul.f32.gmra.mxu0 %v272
  %v672 = vpop.f32.mrf.mxu0
  %v673 = vadd.f32 %v145, %v672
  %674 = vmatmul.f32.gmra.mxu0 %v275
  %v675 = vpop.f32.mrf.mxu0
  %v676 = vadd.f32 %v145, %v675
  %677 = vmatmul.f32.gmra.mxu0 %v278
  %v678 = vpop.f32.mrf.mxu0
  %v679 = vadd.f32 %v145, %v678
  %680 = vmatmul.f32.gmra.mxu0 %v281
  %v681 = vpop.f32.mrf.mxu0
  %v682 = vadd.f32 %v145, %v681
  %683 = vmatmul.f32.gmra.mxu0 %v284
  %v684 = vpop.f32.mrf.mxu0
  %v685 = vadd.f32 %v145, %v684
  %686 = vmatmul.f32.gmra.mxu0 %v287
  %v687 = vpop.f32.mrf.mxu0
  %v688 = vadd.f32 %v145, %v687
  %689 = vmatmul.f32.gmra.mxu0 %v290
  %v690 = vpop.f32.mrf.mxu0
  %v691 = vadd.f32 %v145, %v690
  %692 = vmatmul.f32.gmra.mxu0 %v293
  %v693 = vpop.f32.mrf.mxu0
  %v694 = vadd.f32 %v145, %v693
  %695 = vmatmul.f32.gmra.mxu0 %v296
  %v696 = vpop.f32.mrf.mxu0
  %v697 = vadd.f32 %v145, %v696
  %698 = vmatmul.f32.gmra.mxu0 %v299
  %v699 = vpop.f32.mrf.mxu0
  %v700 = vadd.f32 %v145, %v699
  %701 = vmatmul.f32.gmra.mxu0 %v302
  %v702 = vpop.f32.mrf.mxu0
  %v703 = vadd.f32 %v145, %v702
  %704 = vmatmul.f32.gmra.mxu0 %v305
  %v705 = vpop.f32.mrf.mxu0
  %v706 = vadd.f32 %v145, %v705
  %707 = vmatmul.f32.gmra.mxu0 %v308
  %v708 = vpop.f32.mrf.mxu0
  %v709 = vadd.f32 %v145, %v708
  %710 = vmatmul.f32.gmra.mxu0 %v311
  %v711 = vpop.f32.mrf.mxu0
  %v712 = vadd.f32 %v145, %v711
  %713 = vmatmul.f32.gmra.mxu0 %v314
  %v714 = vpop.f32.mrf.mxu0
  %v715 = vadd.f32 %v145, %v714
  %716 = vmatmul.f32.gmra.mxu0 %v317
  %v717 = vpop.f32.mrf.mxu0
  %v718 = vadd.f32 %v145, %v717
  %719 = vmatmul.f32.gmra.mxu0 %v320
  %v720 = vpop.f32.mrf.mxu0
  %v721 = vadd.f32 %v145, %v720
  %722 = vmatmul.f32.gmra.mxu0 %v323
  %v723 = vpop.f32.mrf.mxu0
  %v724 = vadd.f32 %v145, %v723
  %725 = vmatmul.f32.gmra.mxu0 %v326
  %v726 = vpop.f32.mrf.mxu0
  %v727 = vadd.f32 %v145, %v726
  %728 = vmatmul.f32.gmra.mxu0 %v329
  %v729 = vpop.f32.mrf.mxu0
  %v730 = vadd.f32 %v145, %v729
  %731 = vmatmul.f32.gmra.mxu0 %v332
  %v732 = vpop.f32.mrf.mxu0
  %v733 = vadd.f32 %v145, %v732
  %734 = vmatmul.f32.gmra.mxu0 %v335
  %v735 = vpop.f32.mrf.mxu0
  %v736 = vadd.f32 %v145, %v735
  %737 = vmatmul.f32.gmra.mxu0 %v338
  %v738 = vpop.f32.mrf.mxu0
  %v739 = vadd.f32 %v145, %v738
  %740 = vmatmul.f32.gmra.mxu0 %v341
  %v741 = vpop.f32.mrf.mxu0
  %v742 = vadd.f32 %v145, %v741
  %743 = vmatmul.f32.gmra.mxu0 %v344
  %v744 = vpop.f32.mrf.mxu0
  %v745 = vadd.f32 %v145, %v744
  %746 = vmatmul.f32.gmra.mxu0 %v347
  %v747 = vpop.f32.mrf.mxu0
  %v748 = vadd.f32 %v145, %v747
  %749 = vmatmul.f32.gmra.mxu0 %v350
  %v750 = vpop.f32.mrf.mxu0
  %v751 = vadd.f32 %v145, %v750
  %752 = vmatmul.f32.gmra.mxu0 %v353
  %v753 = vpop.f32.mrf.mxu0
  %v754 = vadd.f32 %v145, %v753
  %755 = vmatmul.f32.gmra.mxu0 %v356
  %v756 = vpop.f32.mrf.mxu0
  %v757 = vadd.f32 %v145, %v756
  %758 = vmatmul.f32.gmra.mxu0 %v359
  %v759 = vpop.f32.mrf.mxu0
  %v760 = vadd.f32 %v145, %v759
  %761 = vmatmul.f32.gmra.mxu0 %v362
  %v762 = vpop.f32.mrf.mxu0
  %v763 = vadd.f32 %v145, %v762
  %764 = vmatmul.f32.gmra.mxu0 %v365
  %v765 = vpop.f32.mrf.mxu0
  %v766 = vadd.f32 %v145, %v765
  %767 = vmatmul.f32.gmra.mxu0 %v368
  %v768 = vpop.f32.mrf.mxu0
  %v769 = vadd.f32 %v145, %v768
  %770 = vmatmul.f32.gmra.mxu0 %v371
  %v771 = vpop.f32.mrf.mxu0
  %v772 = vadd.f32 %v145, %v771
  %773 = vmatmul.f32.gmra.mxu0 %v374
  %v774 = vpop.f32.mrf.mxu0
  %v775 = vadd.f32 %v145, %v774
  %776 = vmatmul.f32.gmra.mxu0 %v377
  %v777 = vpop.f32.mrf.mxu0
  %v778 = vadd.f32 %v145, %v777
  %779 = vmatmul.f32.gmra.mxu0 %v380
  %v780 = vpop.f32.mrf.mxu0
  %v781 = vadd.f32 %v145, %v780
  %782 = vmatmul.f32.gmra.mxu0 %v383
  %v783 = vpop.f32.mrf.mxu0
  %v784 = vadd.f32 %v145, %v783
  %785 = vmatmul.f32.gmra.mxu0 %v386
  %v786 = vpop.f32.mrf.mxu0
  %v787 = vadd.f32 %v145, %v786
  %788 = vmatmul.f32.gmra.mxu0 %v389
  %v789 = vpop.f32.mrf.mxu0
  %v790 = vadd.f32 %v145, %v789
  %791 = vmatmul.f32.gmra.mxu0 %v392
  %v792 = vpop.f32.mrf.mxu0
  %v793 = vadd.f32 %v145, %v792
  %794 = vmatmul.f32.gmra.mxu0 %v395
  %v795 = vpop.f32.mrf.mxu0
  %v796 = vadd.f32 %v145, %v795
  %797 = vmatmul.f32.gmra.mxu0 %v398
  %v798 = vpop.f32.mrf.mxu0
  %v799 = vadd.f32 %v145, %v798
  %800 = vmatmul.f32.gmra.mxu0 %v401
  %v801 = vpop.f32.mrf.mxu0
  %v802 = vadd.f32 %v145, %v801
  %803 = vmatmul.f32.gmra.mxu0 %v404
  %v804 = vpop.f32.mrf.mxu0
  %v805 = vadd.f32 %v145, %v804
  %806 = vmatmul.f32.gmra.mxu0 %v407
  %v807 = vpop.f32.mrf.mxu0
  %v808 = vadd.f32 %v145, %v807
  %809 = vmatmul.f32.gmra.mxu0 %v410
  %v810 = vpop.f32.mrf.mxu0
  %v811 = vadd.f32 %v145, %v810
  %812 = vmatmul.f32.gmra.mxu0 %v413
  %v813 = vpop.f32.mrf.mxu0
  %v814 = vadd.f32 %v145, %v813
  %815 = vmatmul.f32.gmra.mxu0 %v416
  %v816 = vpop.f32.mrf.mxu0
  %v817 = vadd.f32 %v145, %v816
  %818 = vmatmul.f32.gmra.mxu0 %v419
  %v819 = vpop.f32.mrf.mxu0
  %v820 = vadd.f32 %v145, %v819
  %821 = vmatmul.f32.gmra.mxu0 %v422
  %v822 = vpop.f32.mrf.mxu0
  %v823 = vadd.f32 %v145, %v822
  %824 = vmatmul.f32.gmra.mxu0 %v425
  %v825 = vpop.f32.mrf.mxu0
  %v826 = vadd.f32 %v145, %v825
  %827 = vmatmul.f32.gmra.mxu0 %v428
  %v828 = vpop.f32.mrf.mxu0
  %v829 = vadd.f32 %v145, %v828
  %830 = vmatmul.f32.gmra.mxu0 %v431
  %v831 = vpop.f32.mrf.mxu0
  %v832 = vadd.f32 %v145, %v831
  %833 = vmatmul.f32.gmra.mxu0 %v434
  %v834 = vpop.f32.mrf.mxu0
  %v835 = vadd.f32 %v145, %v834
  %836 = vmatmul.f32.gmra.mxu0 %v437
  %v837 = vpop.f32.mrf.mxu0
  %v838 = vadd.f32 %v145, %v837
  %839 = vmatmul.f32.gmra.mxu0 %v440
  %v840 = vpop.f32.mrf.mxu0
  %v841 = vadd.f32 %v145, %v840
  %842 = vmatmul.f32.gmra.mxu0 %v443
  %v843 = vpop.f32.mrf.mxu0
  %v844 = vadd.f32 %v145, %v843
  %845 = vmatmul.f32.gmra.mxu0 %v446
  %v846 = vpop.f32.mrf.mxu0
  %v847 = vadd.f32 %v145, %v846
  %848 = vmatmul.f32.gmra.mxu0 %v449
  %v849 = vpop.f32.mrf.mxu0
  %v850 = vadd.f32 %v145, %v849
  %851 = vmatmul.f32.gmra.mxu0 %v452
  %v852 = vpop.f32.mrf.mxu0
  %v853 = vadd.f32 %v145, %v852
  %854 = vmatmul.f32.gmra.mxu0 %v455
  %v855 = vpop.f32.mrf.mxu0
  %v856 = vadd.f32 %v145, %v855
  %857 = vmatmul.f32.gmra.mxu0 %v458
  %v858 = vpop.f32.mrf.mxu0
  %v859 = vadd.f32 %v145, %v858
  %860 = vmatmul.f32.gmra.mxu0 %v461
  %v861 = vpop.f32.mrf.mxu0
  %v862 = vadd.f32 %v145, %v861
  %863 = vmatmul.f32.gmra.mxu0 %v464
  %v864 = vpop.f32.mrf.mxu0
  %v865 = vadd.f32 %v145, %v864
  %866 = vmatmul.f32.gmra.mxu0 %v467
  %v867 = vpop.f32.mrf.mxu0
  %v868 = vadd.f32 %v145, %v867
  %869 = vmatmul.f32.gmra.mxu0 %v470
  %v870 = vpop.f32.mrf.mxu0
  %v871 = vadd.f32 %v145, %v870
  %872 = vmatmul.f32.gmra.mxu0 %v473
  %v873 = vpop.f32.mrf.mxu0
  %v874 = vadd.f32 %v145, %v873
  %875 = vmatmul.f32.gmra.mxu0 %v476
  %v876 = vpop.f32.mrf.mxu0
  %v877 = vadd.f32 %v145, %v876
  %878 = vmatmul.f32.gmra.mxu0 %v479
  %v879 = vpop.f32.mrf.mxu0
  %v880 = vadd.f32 %v145, %v879
  %881 = vmatmul.f32.gmra.mxu0 %v482
  %v882 = vpop.f32.mrf.mxu0
  %v883 = vadd.f32 %v145, %v882
  %884 = vmatmul.f32.gmra.mxu0 %v485
  %v885 = vpop.f32.mrf.mxu0
  %v886 = vadd.f32 %v145, %v885
  %887 = vmatmul.f32.gmra.mxu0 %v488
  %v888 = vpop.f32.mrf.mxu0
  %v889 = vadd.f32 %v145, %v888
  %890 = vmatmul.f32.gmra.mxu0 %v491
  %v891 = vpop.f32.mrf.mxu0
  %v892 = vadd.f32 %v145, %v891
  %893 = vmatmul.f32.gmra.mxu0 %v494
  %v894 = vpop.f32.mrf.mxu0
  %v895 = vadd.f32 %v145, %v894
  %896 = vmatmul.f32.gmra.mxu0 %v497
  %v897 = vpop.f32.mrf.mxu0
  %v898 = vadd.f32 %v145, %v897
  %899 = vmatmul.f32.gmra.mxu0 %v500
  %v900 = vpop.f32.mrf.mxu0
  %v901 = vadd.f32 %v145, %v900
  %902 = vmatmul.f32.gmra.mxu0 %v503
  %v903 = vpop.f32.mrf.mxu0
  %v904 = vadd.f32 %v145, %v903
  %905 = vmatmul.f32.gmra.mxu0 %v506
  %v906 = vpop.f32.mrf.mxu0
  %v907 = vadd.f32 %v145, %v906
  %908 = vmatmul.f32.gmra.mxu0 %v509
  %v909 = vpop.f32.mrf.mxu0
  %v910 = vadd.f32 %v145, %v909
  %911 = vmatmul.f32.gmra.mxu0 %v512
  %v912 = vpop.f32.mrf.mxu0
  %v913 = vadd.f32 %v145, %v912
  %914 = vmatmul.f32.gmra.mxu0 %v515
  %v915 = vpop.f32.mrf.mxu0
  %v916 = vadd.f32 %v145, %v915
  %917 = vmatmul.f32.gmra.mxu0 %v518
  %v918 = vpop.f32.mrf.mxu0
  %v919 = vadd.f32 %v145, %v918
  %920 = vmatmul.f32.gmra.mxu0 %v521
  %v921 = vpop.f32.mrf.mxu0
  %v922 = vadd.f32 %v145, %v921
  %923 = vmatmul.f32.gmra.mxu0 %v524
  %v924 = vpop.f32.mrf.mxu0
  %v925 = vadd.f32 %v145, %v924
  %926 = vmatmul.f32.gmra.mxu0 %v527
  %v927 = vpop.f32.mrf.mxu0
  %v928 = vadd.f32 %v145, %v927
  %929 = vmatmul.f32.gmra.mxu0 %v530
  %v930 = vpop.f32.mrf.mxu0
  %v931 = vadd.f32 %v145, %v930
  %932 = vdwg.mxu0
  %vm933 = vcmask 130048
  %934 = vst.msk [vmem:[%s3] sm:$0xff] %vm933, %v550
  %935 = vst.msk [vmem:[%s3 + $0x8] sm:$0xff] %vm933, %v553
  %936 = vst.msk [vmem:[%s3 + $0x10] sm:$0xff] %vm933, %v556
  %937 = vst.msk [vmem:[%s3 + $0x18] sm:$0xff] %vm933, %v559
  %938 = vst.msk [vmem:[%s3 + $0x20] sm:$0xff] %vm933, %v562
  %939 = vst.msk [vmem:[%s3 + $0x28] sm:$0xff] %vm933, %v565
  %940 = vst.msk [vmem:[%s3 + $0x30] sm:$0xff] %vm933, %v568
  %941 = vst.msk [vmem:[%s3 + $0x38] sm:$0xff] %vm933, %v571
  %942 = vst.msk [vmem:[%s3 + $0x40] sm:$0xff] %vm933, %v574
  %943 = vst.msk [vmem:[%s3 + $0x48] sm:$0xff] %vm933, %v577
  %944 = vst.msk [vmem:[%s3 + $0x50] sm:$0xff] %vm933, %v580
  %945 = vst.msk [vmem:[%s3 + $0x58] sm:$0xff] %vm933, %v583
  %946 = vst.msk [vmem:[%s3 + $0x60] sm:$0xff] %vm933, %v586
  %947 = vst.msk [vmem:[%s3 + $0x68] sm:$0xff] %vm933, %v589
  %948 = vst.msk [vmem:[%s3 + $0x70] sm:$0xff] %vm933, %v592
  %949 = vst.msk [vmem:[%s3 + $0x78] sm:$0xff] %vm933, %v595
  %950 = vst.msk [vmem:[%s3 + $0x80] sm:$0xff] %vm933, %v598
  %951 = vst.msk [vmem:[%s3 + $0x88] sm:$0xff] %vm933, %v601
  %952 = vst.msk [vmem:[%s3 + $0x90] sm:$0xff] %vm933, %v604
  %953 = vst.msk [vmem:[%s3 + $0x98] sm:$0xff] %vm933, %v607
  %954 = vst.msk [vmem:[%s3 + $0xa0] sm:$0xff] %vm933, %v610
  %955 = vst.msk [vmem:[%s3 + $0xa8] sm:$0xff] %vm933, %v613
  %956 = vst.msk [vmem:[%s3 + $0xb0] sm:$0xff] %vm933, %v616
  %957 = vst.msk [vmem:[%s3 + $0xb8] sm:$0xff] %vm933, %v619
  %958 = vst.msk [vmem:[%s3 + $0xc0] sm:$0xff] %vm933, %v622
  %959 = vst.msk [vmem:[%s3 + $0xc8] sm:$0xff] %vm933, %v625
  %960 = vst.msk [vmem:[%s3 + $0xd0] sm:$0xff] %vm933, %v628
  %961 = vst.msk [vmem:[%s3 + $0xd8] sm:$0xff] %vm933, %v631
  %962 = vst.msk [vmem:[%s3 + $0xe0] sm:$0xff] %vm933, %v634
  %963 = vst.msk [vmem:[%s3 + $0xe8] sm:$0xff] %vm933, %v637
  %964 = vst.msk [vmem:[%s3 + $0xf0] sm:$0xff] %vm933, %v640
  %965 = vst.msk [vmem:[%s3 + $0xf8] sm:$0xff] %vm933, %v643
  %966 = vst.msk [vmem:[%s3 + $0x100] sm:$0xff] %vm933, %v646
  %967 = vst.msk [vmem:[%s3 + $0x108] sm:$0xff] %vm933, %v649
  %968 = vst.msk [vmem:[%s3 + $0x110] sm:$0xff] %vm933, %v652
  %969 = vst.msk [vmem:[%s3 + $0x118] sm:$0xff] %vm933, %v655
  %970 = vst.msk [vmem:[%s3 + $0x120] sm:$0xff] %vm933, %v658
  %971 = vst.msk [vmem:[%s3 + $0x128] sm:$0xff] %vm933, %v661
  %972 = vst.msk [vmem:[%s3 + $0x130] sm:$0xff] %vm933, %v664
  %973 = vst.msk [vmem:[%s3 + $0x138] sm:$0xff] %vm933, %v667
  %974 = vst.msk [vmem:[%s3 + $0x140] sm:$0xff] %vm933, %v670
  %975 = vst.msk [vmem:[%s3 + $0x148] sm:$0xff] %vm933, %v673
  %976 = vst.msk [vmem:[%s3 + $0x150] sm:$0xff] %vm933, %v676
  %977 = vst.msk [vmem:[%s3 + $0x158] sm:$0xff] %vm933, %v679
  %978 = vst.msk [vmem:[%s3 + $0x160] sm:$0xff] %vm933, %v682
  %979 = vst.msk [vmem:[%s3 + $0x168] sm:$0xff] %vm933, %v685
  %980 = vst.msk [vmem:[%s3 + $0x170] sm:$0xff] %vm933, %v688
  %981 = vst.msk [vmem:[%s3 + $0x178] sm:$0xff] %vm933, %v691
  %982 = vst.msk [vmem:[%s3 + $0x180] sm:$0xff] %vm933, %v694
  %983 = vst.msk [vmem:[%s3 + $0x188] sm:$0xff] %vm933, %v697
  %984 = vst.msk [vmem:[%s3 + $0x190] sm:$0xff] %vm933, %v700
  %985 = vst.msk [vmem:[%s3 + $0x198] sm:$0xff] %vm933, %v703
  %986 = vst.msk [vmem:[%s3 + $0x1a0] sm:$0xff] %vm933, %v706
  %987 = vst.msk [vmem:[%s3 + $0x1a8] sm:$0xff] %vm933, %v709
  %988 = vst.msk [vmem:[%s3 + $0x1b0] sm:$0xff] %vm933, %v712
  %989 = vst.msk [vmem:[%s3 + $0x1b8] sm:$0xff] %vm933, %v715
  %990 = vst.msk [vmem:[%s3 + $0x1c0] sm:$0xff] %vm933, %v718
  %991 = vst.msk [vmem:[%s3 + $0x1c8] sm:$0xff] %vm933, %v721
  %992 = vst.msk [vmem:[%s3 + $0x1d0] sm:$0xff] %vm933, %v724
  %993 = vst.msk [vmem:[%s3 + $0x1d8] sm:$0xff] %vm933, %v727
  %994 = vst.msk [vmem:[%s3 + $0x1e0] sm:$0xff] %vm933, %v730
  %995 = vst.msk [vmem:[%s3 + $0x1e8] sm:$0xff] %vm933, %v733
  %996 = vst.msk [vmem:[%s3 + $0x1f0] sm:$0xff] %vm933, %v736
  %997 = vst.msk [vmem:[%s3 + $0x1f8] sm:$0xff] %vm933, %v739
  %998 = vst.msk [vmem:[%s3 + $0x200] sm:$0xff] %vm933, %v742
  %999 = vst.msk [vmem:[%s3 + $0x208] sm:$0xff] %vm933, %v745
  %1000 = vst.msk [vmem:[%s3 + $0x210] sm:$0xff] %vm933, %v748
  %1001 = vst.msk [vmem:[%s3 + $0x218] sm:$0xff] %vm933, %v751
  %1002 = vst.msk [vmem:[%s3 + $0x220] sm:$0xff] %vm933, %v754
  %1003 = vst.msk [vmem:[%s3 + $0x228] sm:$0xff] %vm933, %v757
  %1004 = vst.msk [vmem:[%s3 + $0x230] sm:$0xff] %vm933, %v760
  %1005 = vst.msk [vmem:[%s3 + $0x238] sm:$0xff] %vm933, %v763
  %1006 = vst.msk [vmem:[%s3 + $0x240] sm:$0xff] %vm933, %v766
  %1007 = vst.msk [vmem:[%s3 + $0x248] sm:$0xff] %vm933, %v769
  %1008 = vst.msk [vmem:[%s3 + $0x250] sm:$0xff] %vm933, %v772
  %1009 = vst.msk [vmem:[%s3 + $0x258] sm:$0xff] %vm933, %v775
  %1010 = vst.msk [vmem:[%s3 + $0x260] sm:$0xff] %vm933, %v778
  %1011 = vst.msk [vmem:[%s3 + $0x268] sm:$0xff] %vm933, %v781
  %1012 = vst.msk [vmem:[%s3 + $0x270] sm:$0xff] %vm933, %v784
  %1013 = vst.msk [vmem:[%s3 + $0x278] sm:$0xff] %vm933, %v787
  %1014 = vst.msk [vmem:[%s3 + $0x280] sm:$0xff] %vm933, %v790
  %1015 = vst.msk [vmem:[%s3 + $0x288] sm:$0xff] %vm933, %v793
  %1016 = vst.msk [vmem:[%s3 + $0x290] sm:$0xff] %vm933, %v796
  %1017 = vst.msk [vmem:[%s3 + $0x298] sm:$0xff] %vm933, %v799
  %1018 = vst.msk [vmem:[%s3 + $0x2a0] sm:$0xff] %vm933, %v802
  %1019 = vst.msk [vmem:[%s3 + $0x2a8] sm:$0xff] %vm933, %v805
  %1020 = vst.msk [vmem:[%s3 + $0x2b0] sm:$0xff] %vm933, %v808
  %1021 = vst.msk [vmem:[%s3 + $0x2b8] sm:$0xff] %vm933, %v811
  %1022 = vst.msk [vmem:[%s3 + $0x2c0] sm:$0xff] %vm933, %v814
  %1023 = vst.msk [vmem:[%s3 + $0x2c8] sm:$0xff] %vm933, %v817
  %1024 = vst.msk [vmem:[%s3 + $0x2d0] sm:$0xff] %vm933, %v820
  %1025 = vst.msk [vmem:[%s3 + $0x2d8] sm:$0xff] %vm933, %v823
  %1026 = vst.msk [vmem:[%s3 + $0x2e0] sm:$0xff] %vm933, %v826
  %1027 = vst.msk [vmem:[%s3 + $0x2e8] sm:$0xff] %vm933, %v829
  %1028 = vst.msk [vmem:[%s3 + $0x2f0] sm:$0xff] %vm933, %v832
  %1029 = vst.msk [vmem:[%s3 + $0x2f8] sm:$0xff] %vm933, %v835
  %1030 = vst.msk [vmem:[%s3 + $0x300] sm:$0xff] %vm933, %v838
  %1031 = vst.msk [vmem:[%s3 + $0x308] sm:$0xff] %vm933, %v841
  %1032 = vst.msk [vmem:[%s3 + $0x310] sm:$0xff] %vm933, %v844
  %1033 = vst.msk [vmem:[%s3 + $0x318] sm:$0xff] %vm933, %v847
  %1034 = vst.msk [vmem:[%s3 + $0x320] sm:$0xff] %vm933, %v850
  %1035 = vst.msk [vmem:[%s3 + $0x328] sm:$0xff] %vm933, %v853
  %1036 = vst.msk [vmem:[%s3 + $0x330] sm:$0xff] %vm933, %v856
  %1037 = vst.msk [vmem:[%s3 + $0x338] sm:$0xff] %vm933, %v859
  %1038 = vst.msk [vmem:[%s3 + $0x340] sm:$0xff] %vm933, %v862
  %1039 = vst.msk [vmem:[%s3 + $0x348] sm:$0xff] %vm933, %v865
  %1040 = vst.msk [vmem:[%s3 + $0x350] sm:$0xff] %vm933, %v868
  %1041 = vst.msk [vmem:[%s3 + $0x358] sm:$0xff] %vm933, %v871
  %1042 = vst.msk [vmem:[%s3 + $0x360] sm:$0xff] %vm933, %v874
  %1043 = vst.msk [vmem:[%s3 + $0x368] sm:$0xff] %vm933, %v877
  %1044 = vst.msk [vmem:[%s3 + $0x370] sm:$0xff] %vm933, %v880
  %1045 = vst.msk [vmem:[%s3 + $0x378] sm:$0xff] %vm933, %v883
  %1046 = vst.msk [vmem:[%s3 + $0x380] sm:$0xff] %vm933, %v886
  %1047 = vst.msk [vmem:[%s3 + $0x388] sm:$0xff] %vm933, %v889
  %1048 = vst.msk [vmem:[%s3 + $0x390] sm:$0xff] %vm933, %v892
  %1049 = vst.msk [vmem:[%s3 + $0x398] sm:$0xff] %vm933, %v895
  %1050 = vst.msk [vmem:[%s3 + $0x3a0] sm:$0xff] %vm933, %v898
  %1051 = vst.msk [vmem:[%s3 + $0x3a8] sm:$0xff] %vm933, %v901
  %1052 = vst.msk [vmem:[%s3 + $0x3b0] sm:$0xff] %vm933, %v904
  %1053 = vst.msk [vmem:[%s3 + $0x3b8] sm:$0xff] %vm933, %v907
  %1054 = vst.msk [vmem:[%s3 + $0x3c0] sm:$0xff] %vm933, %v910
  %1055 = vst.msk [vmem:[%s3 + $0x3c8] sm:$0xff] %vm933, %v913
  %1056 = vst.msk [vmem:[%s3 + $0x3d0] sm:$0xff] %vm933, %v916
  %1057 = vst.msk [vmem:[%s3 + $0x3d8] sm:$0xff] %vm933, %v919
  %1058 = vst.msk [vmem:[%s3 + $0x3e0] sm:$0xff] %vm933, %v922
  %1059 = vst.msk [vmem:[%s3 + $0x3e8] sm:$0xff] %vm933, %v925
  %1060 = vst.msk [vmem:[%s3 + $0x3f0] sm:$0xff] %vm933, %v928
  %1061 = vst.msk [vmem:[%s3 + $0x3f8] sm:$0xff] %vm933, %v931
  // Predicated region
  $region14: #{tpu_custom_call.1} parent=0 // pred_check
    _
  $region15: #{tpu_custom_call.1} parent=0 // pred_check_branch
    %1063 = sbr.rel (0) target = $region17
  $region16: #{tpu_custom_call.1} parent=0 // pred_region
    _
  $region17: #{tpu_custom_call.1} parent=0 // pred_fallthru
    _
  // Predicated region
  $region18: #{tpu_custom_call.1} parent=0 // pred_check
    _
  $region19: #{tpu_custom_call.1} parent=0 // pred_check_branch
    %1065 = sbr.rel (0) target = $region21
  $region20: #{tpu_custom_call.1} parent=0 // pred_region
    _
  $region21: #{tpu_custom_call.1} parent=0 // pred_fallthru
    _

</llo_original>
